<compile_context>
chip_gen: v7x
topology: tpu7x:2x2x1
jax: 0.10.0
libtpu: 0.0.40
codegen_flags: <defaults>
</compile_context>

<pallas_src>
import jax
import jax.numpy as jnp
import numpy as np
from jax import lax
from jax.experimental import pallas as pl
from jax.experimental.pallas import tpu as pltpu

_EPS = 1e-5
_INV_SQRT2 = 0.7071067811865476

# MXU input dtype for the conv matmuls.  Set to jnp.bfloat16 on v6e/v7x for
# ~2x MXU throughput and half the activation bytes (accumulation stays f32 via
# preferred_element_type); kept f32 here so the kernel matches the f32
# reference to 1e-4.
_MXU_DTYPE = jnp.float32

# Bounded per-tile working set; safe on v5e/v6e (128 MiB) and v7x (64 MiB).
_VMEM_LIMIT = 32 * 1024 * 1024


def _gelu_exact(x):
    # torch.nn.GELU() default is the exact erf form.  (tanh-approx would move
    # the transcendental to the EUP slot, but changes semantics slightly.)
    return 0.5 * x * (1.0 + lax.erf(x * _INV_SQRT2))


def _conv1d_same(x, w_packed, pad_ref):
    """'same' Conv1d of one sequence as a single fused im2col MXU matmul.

    x:        (C, L) value, channels on sublanes, length on lanes.
    w_packed: (D, K*C) value with w_packed[d, k*C + c] == w_torch[d, c, k].
    pad_ref:  (C, L + 2*pad) VMEM scratch for the zero-padded input.
    Returns the (D, L) conv output in f32.
    """
    C, L = x.shape
    K = w_packed.shape[1] // C
    pad = (K - 1) // 2
    if pad > 0:  # zero halo columns (tiny masked stores), then write the body
        pad_ref[:, :pad] = jnp.zeros((C, pad), pad_ref.dtype)
        pad_ref[:, L + pad:L + 2 * pad] = jnp.zeros((C, pad), pad_ref.dtype)
    pad_ref[:, pad:pad + L] = x.astype(pad_ref.dtype)
    xp = pad_ref[...]
    # im2col slab (K*C, L): row k*C + c holds x[c, l + k - pad].
    slab = jnp.concatenate([xp[:, k:k + L] for k in range(K)], axis=0)
    return jnp.dot(w_packed.astype(_MXU_DTYPE), slab.astype(_MXU_DTYPE),
                   preferred_element_type=jnp.float32)


def _accum_channel_stats(sum_ref, sumsq_ref, y):
    """Accumulate per-channel sum / sum-of-squares of y (D, L) across the grid."""
    @pl.when(pl.program_id(0) == 0)
    def _():
        sum_ref[...] = jnp.zeros_like(sum_ref)
        sumsq_ref[...] = jnp.zeros_like(sumsq_ref)
    sum_ref[...] += jnp.sum(y, axis=1, keepdims=True)
    sumsq_ref[...] += jnp.sum(y * y, axis=1, keepdims=True)


def _bn_scale_shift(sum_ref, sumsq_ref, gamma_ref, beta_ref, count):
    """Fold BatchNorm (batch stats, biased var) into one per-channel FMA."""
    mean = sum_ref[...] / count                      # (D, 1)
    var = sumsq_ref[...] / count - mean * mean       # E[x^2] - E[x]^2
    scale = gamma_ref[...] * lax.rsqrt(var + _EPS)
    shift = beta_ref[...] - mean * scale
    return scale, shift


# --------------------------- kernels (3 grid passes) ------------------------

def _conv1_stats_kernel(x_ref, w1_ref, y1_ref, s1_ref, ss1_ref, xpad_ref):
    y = _conv1d_same(x_ref[0].astype(jnp.float32), w1_ref[...], xpad_ref)
    y1_ref[0] = y.astype(y1_ref.dtype)
    _accum_channel_stats(s1_ref, ss1_ref, y)


def _bn1_gelu_conv2_stats_kernel(y1_ref, s1_ref, ss1_ref, g1_ref, b1_ref,
                                 w2_ref, y2_ref, s2_ref, ss2_ref, hpad_ref):
    L = y1_ref.shape[2]
    count = pl.num_programs(0) * L                   # BN stats over (B, L)
    scale, shift = _bn_scale_shift(s1_ref, ss1_ref, g1_ref, b1_ref, count)
    h1 = _gelu_exact(y1_ref[0] * scale + shift)      # Dropout1d(p=0) == id
    y2 = _conv1d_same(h1, w2_ref[...], hpad_ref)
    y2_ref[0] = y2.astype(y2_ref.dtype)
    _accum_channel_stats(s2_ref, ss2_ref, y2)


def _bn2_gelu_pool_kernel(y2_ref, s2_ref, ss2_ref, g2_ref, b2_ref,
                          out_ref, pool_ref, h2t_ref):
    L = y2_ref.shape[2]
    count = pl.num_programs(0) * L
    scale, shift = _bn_scale_shift(s2_ref, ss2_ref, g2_ref, b2_ref, count)
    h2 = _gelu_exact(y2_ref[0] * scale + shift)      # (D, L)
    out_ref[0] = h2.astype(out_ref.dtype)
    # MaxPool1d(kernel=2, stride=2): pairs sit along the lane (L) axis, so put
    # L on sublanes via one XLU transpose into a VMEM scratch and use stride-2
    # sublane reads.  The pipelined out_ref is never read back.
    h2t_ref[...] = jnp.transpose(h2)                 # (L, D)
    ev = h2t_ref[pl.ds(0, L // 2, 2), :]
    od = h2t_ref[pl.ds(1, L // 2, 2), :]
    pool_ref[0] = jnp.transpose(jnp.maximum(ev, od)).astype(pool_ref.dtype)


# --------------------------------- wrapper ----------------------------------

def down_block(x, w1, g1, b1, w2, g2, b2):
    """DownBlock forward.

    x:  (B, Cin, L) float32, torch NCW layout.
    w1: (D, Cin, K), w2: (D, D, K) torch Conv1d weights (conv bias disabled).
    g*, b*: (D,) BatchNorm1d weight / bias.
    Returns (out (B, D, L), pool (B, D, L//2)), both float32 NCW.
    """
    B, Cin, L = x.shape
    D, _, K = w1.shape
    assert K % 2 == 1, "kernel_size must be odd for same-length conv"
    pad = (K - 1) // 2

    # Pack conv weights for the fused im2col matmul (tiny, weight-sized ops).
    w1p = jnp.transpose(w1, (0, 2, 1)).reshape(D, K * Cin).astype(jnp.float32)
    w2p = jnp.transpose(w2, (0, 2, 1)).reshape(D, K * D).astype(jnp.float32)
    g1c = jnp.asarray(g1, jnp.float32).reshape(D, 1)
    b1c = jnp.asarray(b1, jnp.float32).reshape(D, 1)
    g2c = jnp.asarray(g2, jnp.float32).reshape(D, 1)
    b2c = jnp.asarray(b2, jnp.float32).reshape(D, 1)

    row_spec = pl.BlockSpec((1, D, L), lambda b: (b, 0, 0))
    row_shape = jax.ShapeDtypeStruct((B, D, L), jnp.float32)
    stat_spec = pl.BlockSpec((D, 1), lambda b: (0, 0))      # resident across grid
    stat_shape = jax.ShapeDtypeStruct((D, 1), jnp.float32)

    seq_params = pltpu.CompilerParams(   # stats accumulators -> "arbitrary"
        dimension_semantics=("arbitrary",), vmem_limit_bytes=_VMEM_LIMIT)
    par_params = pltpu.CompilerParams(   # independent rows -> megacore (v7x)
        dimension_semantics=("parallel",), vmem_limit_bytes=_VMEM_LIMIT)

    # Pass 1: conv1 + BN1 statistics.
    y1, s1, ss1 = pl.pallas_call(
        _conv1_stats_kernel,
        grid=(B,),
        in_specs=[pl.BlockSpec((1, Cin, L), lambda b: (b, 0, 0)),
                  pl.BlockSpec((D, K * Cin), lambda b: (0, 0))],
        out_specs=(row_spec, stat_spec, stat_spec),
        out_shape=(row_shape, stat_shape, stat_shape),
        scratch_shapes=[pltpu.VMEM((Cin, L + 2 * pad), jnp.float32)],
        compiler_params=seq_params,
    )(x.astype(jnp.float32), w1p)

    # Pass 2: BN1 (folded scale/shift) + GELU + conv2 + BN2 statistics.
    y2, s2, ss2 = pl.pallas_call(
        _bn1_gelu_conv2_stats_kernel,
        grid=(B,),
        in_specs=[row_spec, stat_spec, stat_spec, stat_spec, stat_spec,
                  pl.BlockSpec((D, K * D), lambda b: (0, 0))],
        out_specs=(row_spec, stat_spec, stat_spec),
        out_shape=(row_shape, stat_shape, stat_shape),
        scratch_shapes=[pltpu.VMEM((D, L + 2 * pad), jnp.float32)],
        compiler_params=seq_params,
    )(y1, s1, ss1, g1c, b1c, w2p)

    # Pass 3: BN2 (folded scale/shift) + GELU + MaxPool1d(2, 2).
    out, pool = pl.pallas_call(
        _bn2_gelu_pool_kernel,
        grid=(B,),
        in_specs=[row_spec, stat_spec, stat_spec, stat_spec, stat_spec],
        out_specs=(row_spec, pl.BlockSpec((1, D, L // 2), lambda b: (b, 0, 0))),
        out_shape=(row_shape, jax.ShapeDtypeStruct((B, D, L // 2), jnp.float32)),
        scratch_shapes=[pltpu.VMEM((L, D), jnp.float32)],
        compiler_params=par_params,
    )(y2, s2, ss2, g2c, b2c)

    return out, pool


# -------------------------------- reference ---------------------------------

def reference(x, w1, g1, b1, w2, g2, b2):
    """Pure-JAX reference in torch NCW layout."""
    def block(x, w, g, b):
        pad = (w.shape[-1] - 1) // 2
        y = lax.conv_general_dilated(x, w, window_strides=(1,),
                                     padding=[(pad, pad)],
                                     dimension_numbers=('NCH', 'OIH', 'NCH'))
        mean = jnp.mean(y, axis=(0, 2), keepdims=True)
        var = jnp.mean((y - mean) ** 2, axis=(0, 2), keepdims=True)
        y = (y - mean) / jnp.sqrt(var + _EPS)
        y = y * g.reshape(1, -1, 1) + b.reshape(1, -1, 1)
        return jax.nn.gelu(y, approximate=False)
    h = block(block(x, w1, g1, b1), w2, g2, b2)
    B, D, L = h.shape
    pool = jnp.max(h.reshape(B, D, L // 2, 2), axis=-1)
    return h, pool


if __name__ == "__main__":
    B, Cin, L = 2, 4, 16     # batch, in channels, length
    D, K = 8, 3              # dim, odd kernel_size

    key = jax.random.PRNGKey(0)
    k_x, k_w1, k_w2, k_g1, k_b1, k_g2, k_b2 = jax.random.split(key, 7)
    x = jax.random.normal(k_x, (B, Cin, L), dtype=jnp.float32)
    # Conv1d weights (conv_bias=False in the module).
    w1 = 0.2 * jax.random.normal(k_w1, (D, Cin, K), dtype=jnp.float32)
    w2 = 0.2 * jax.random.normal(k_w2, (D, D, K), dtype=jnp.float32)
    # BatchNorm1d affine params (perturbed from the 1/0 init to exercise them).
    g1 = 1.0 + 0.1 * jax.random.normal(k_g1, (D,), dtype=jnp.float32)
    b1 = 0.1 * jax.random.normal(k_b1, (D,), dtype=jnp.float32)
    g2 = 1.0 + 0.1 * jax.random.normal(k_g2, (D,), dtype=jnp.float32)
    b2 = 0.1 * jax.random.normal(k_b2, (D,), dtype=jnp.float32)

    out, pool = down_block(x, w1, g1, b1, w2, g2, b2)
    out = jax.block_until_ready(out)
    pool = jax.block_until_ready(pool)

    ref_out, ref_pool = reference(x, w1, g1, b1, w2, g2, b2)
    assert out.shape == (B, D, L) and pool.shape == (B, D, L // 2)
    assert np.allclose(np.asarray(out), np.asarray(ref_out), rtol=1e-4, atol=1e-4)
    assert np.allclose(np.asarray(pool), np.asarray(ref_pool), rtol=1e-4, atol=1e-4)
    print("KERNEL_OK")
</pallas_src>

<mosaic_0001>
module attributes {stable_mosaic.version = 11 : i64} {
  func.func @_conv1_stats_kernel(%arg0: i32, %arg1: memref<1x4x16xf32, #tpu.memory_space<vmem>>, %arg2: memref<8x12xf32, #tpu.memory_space<vmem>>, %arg3: memref<1x8x16xf32, #tpu.memory_space<vmem>>, %arg4: memref<8x1xf32, #tpu.memory_space<vmem>>, %arg5: memref<8x1xf32, #tpu.memory_space<vmem>>, %arg6: memref<4x18xf32, #tpu.memory_space<vmem>>) attributes {dimension_semantics = [#tpu.dimension_semantics<arbitrary>], iteration_bounds = array<i64: 2>, scalar_prefetch = 0 : i64, scratch_operands = 1 : i64, tpu.core_type = #tpu.core_type<tc>, window_params = [{transform_indices = @transform_0, window_bounds = array<i64: 1, 4, 16>}, {pipeline_mode = #tpu.pipeline_mode<synchronous>, transform_indices = @transform_1, window_bounds = array<i64: 8, 12>}, {transform_indices = @transform_2, window_bounds = array<i64: 1, 8, 16>}, {pipeline_mode = #tpu.pipeline_mode<synchronous>, transform_indices = @transform_3, window_bounds = array<i64: 8, 1>}, {pipeline_mode = #tpu.pipeline_mode<synchronous>, transform_indices = @transform_4, window_bounds = array<i64: 8, 1>}]} {
    %c0 = arith.constant 0 : index
    %c0_0 = arith.constant 0 : index
    %c0_1 = arith.constant 0 : index
    %0 = vector.load %arg1[%c0, %c0_0, %c0_1] : memref<1x4x16xf32, #tpu.memory_space<vmem>>, vector<1x4x16xf32>
    %1 = vector.shape_cast %0 : vector<1x4x16xf32> to vector<4x16xf32>
    %c0_2 = arith.constant 0 : index
    %c0_3 = arith.constant 0 : index
    %2 = vector.load %arg2[%c0_2, %c0_3] : memref<8x12xf32, #tpu.memory_space<vmem>>, vector<8x12xf32>
    %cst = arith.constant 0.000000e+00 : f32
    %3 = vector.broadcast %cst : f32 to vector<4x1xf32>
    %c0_4 = arith.constant 0 : index
    %c0_5 = arith.constant 0 : index
    %4 = vector.load %arg6[%c0_4, %c0_5] : memref<4x18xf32, #tpu.memory_space<vmem>>, vector<4x1xf32>
    tpu.vector_store %arg6[%c0_4, %c0_5], %3 {strides = array<i32>} : memref<4x18xf32, #tpu.memory_space<vmem>>, vector<4x1xf32>,
    %cst_6 = arith.constant 0.000000e+00 : f32
    %5 = vector.broadcast %cst_6 : f32 to vector<4x1xf32>
    %c0_7 = arith.constant 0 : index
    %c17 = arith.constant 17 : index
    %6 = vector.load %arg6[%c0_7, %c17] : memref<4x18xf32, #tpu.memory_space<vmem>>, vector<4x1xf32>
    tpu.vector_store %arg6[%c0_7, %c17], %5 {strides = array<i32>} : memref<4x18xf32, #tpu.memory_space<vmem>>, vector<4x1xf32>,
    %c0_8 = arith.constant 0 : index
    %c1 = arith.constant 1 : index
    %7 = vector.load %arg6[%c0_8, %c1] : memref<4x18xf32, #tpu.memory_space<vmem>>, vector<4x16xf32>
    tpu.vector_store %arg6[%c0_8, %c1], %1 {strides = array<i32>} : memref<4x18xf32, #tpu.memory_space<vmem>>, vector<4x16xf32>,
    %c0_9 = arith.constant 0 : index
    %c0_10 = arith.constant 0 : index
    %8 = vector.load %arg6[%c0_9, %c0_10] : memref<4x18xf32, #tpu.memory_space<vmem>>, vector<4x18xf32>
    %9 = vector.extract_strided_slice %8 {offsets = [0, 0], sizes = [4, 16], strides = [1, 1]} : vector<4x18xf32> to vector<4x16xf32>
    %10 = vector.extract_strided_slice %8 {offsets = [0, 1], sizes = [4, 16], strides = [1, 1]} : vector<4x18xf32> to vector<4x16xf32>
    %11 = vector.extract_strided_slice %8 {offsets = [0, 2], sizes = [4, 16], strides = [1, 1]} : vector<4x18xf32> to vector<4x16xf32>
    %12 = tpu.concatenate %9, %10, %11 in 0 : vector<4x16xf32>, vector<4x16xf32>, vector<4x16xf32> -> vector<12x16xf32>
    %cst_11 = arith.constant dense<0.000000e+00> : vector<8x16xf32>
    %13 = tpu.matmul %2, %12, %cst_11 {dimension_numbers = #tpu.dot_dimension_numbers<[1], [0], [0], [1], [0, 0, 1, 1], [], []>} : vector<8x12xf32>, vector<12x16xf32>, vector<8x16xf32> -> vector<8x16xf32>
    %c0_12 = arith.constant 0 : index
    %c0_13 = arith.constant 0 : index
    %c0_14 = arith.constant 0 : index
    %14 = vector.load %arg3[%c0_12, %c0_13, %c0_14] : memref<1x8x16xf32, #tpu.memory_space<vmem>>, vector<1x8x16xf32>
    %15 = vector.shape_cast %14 : vector<1x8x16xf32> to vector<8x16xf32>
    %16 = vector.shape_cast %13 : vector<8x16xf32> to vector<1x8x16xf32>
    tpu.vector_store %arg3[%c0_12, %c0_13, %c0_14], %16 {strides = array<i32>} : memref<1x8x16xf32, #tpu.memory_space<vmem>>, vector<1x8x16xf32>,
    %c0_i32 = arith.constant 0 : i32
    %17 = arith.cmpi eq, %arg0, %c0_i32 : i32
    %18 = arith.extui %17 : i1 to i32
    %c0_i32_15 = arith.constant 0 : i32
    %19 = arith.cmpi ne, %18, %c0_i32_15 : i32
    scf.if %19 {
      %cst_26 = arith.constant 0.000000e+00 : f32
      %31 = vector.broadcast %cst_26 : f32 to vector<8x1xf32>
      %c0_27 = arith.constant 0 : index
      %c0_28 = arith.constant 0 : index
      %32 = vector.load %arg4[%c0_27, %c0_28] : memref<8x1xf32, #tpu.memory_space<vmem>>, vector<8x1xf32>
      tpu.vector_store %arg4[%c0_27, %c0_28], %31 {strides = array<i32>} : memref<8x1xf32, #tpu.memory_space<vmem>>, vector<8x1xf32>,
      %cst_29 = arith.constant 0.000000e+00 : f32
      %33 = vector.broadcast %cst_29 : f32 to vector<8x1xf32>
      %c0_30 = arith.constant 0 : index
      %c0_31 = arith.constant 0 : index
      %34 = vector.load %arg5[%c0_30, %c0_31] : memref<8x1xf32, #tpu.memory_space<vmem>>, vector<8x1xf32>
      tpu.vector_store %arg5[%c0_30, %c0_31], %33 {strides = array<i32>} : memref<8x1xf32, #tpu.memory_space<vmem>>, vector<8x1xf32>,
    } else {
    }
    %c0_16 = arith.constant 0 : index
    %c0_17 = arith.constant 0 : index
    %20 = vector.load %arg4[%c0_16, %c0_17] : memref<8x1xf32, #tpu.memory_space<vmem>>, vector<8x1xf32>
    %cst_18 = arith.constant dense<0.000000e+00> : vector<8xf32>
    %21 = vector.multi_reduction <add>, %13, %cst_18 [1] : vector<8x16xf32> to vector<8xf32>
    %22 = vector.shape_cast %21 : vector<8xf32> to vector<8x1xf32>
    %23 = arith.addf %20, %22 : vector<8x1xf32>
    %c0_19 = arith.constant 0 : index
    %c0_20 = arith.constant 0 : index
    %24 = vector.load %arg4[%c0_19, %c0_20] : memref<8x1xf32, #tpu.memory_space<vmem>>, vector<8x1xf32>
    tpu.vector_store %arg4[%c0_19, %c0_20], %23 {strides = array<i32>} : memref<8x1xf32, #tpu.memory_space<vmem>>, vector<8x1xf32>,
    %c0_21 = arith.constant 0 : index
    %c0_22 = arith.constant 0 : index
    %25 = vector.load %arg5[%c0_21, %c0_22] : memref<8x1xf32, #tpu.memory_space<vmem>>, vector<8x1xf32>
    %26 = arith.mulf %13, %13 : vector<8x16xf32>
    %cst_23 = arith.constant dense<0.000000e+00> : vector<8xf32>
    %27 = vector.multi_reduction <add>, %26, %cst_23 [1] : vector<8x16xf32> to vector<8xf32>
    %28 = vector.shape_cast %27 : vector<8xf32> to vector<8x1xf32>
    %29 = arith.addf %25, %28 : vector<8x1xf32>
    %c0_24 = arith.constant 0 : index
    %c0_25 = arith.constant 0 : index
    %30 = vector.load %arg5[%c0_24, %c0_25] : memref<8x1xf32, #tpu.memory_space<vmem>>, vector<8x1xf32>
    tpu.vector_store %arg5[%c0_24, %c0_25], %29 {strides = array<i32>} : memref<8x1xf32, #tpu.memory_space<vmem>>, vector<8x1xf32>,
    return
  }
  func.func @transform_0(%arg0: i32) -> (i32, i32, i32) {
    %c0_i32 = arith.constant 0 : i32
    %c0_i32_0 = arith.constant 0 : i32
    %c0_i32_1 = arith.constant 0 : i32
    return %arg0, %c0_i32, %c0_i32_0 : i32, i32, i32
  }
  func.func @transform_1(%arg0: i32) -> (i32, i32) {
    %c0_i32 = arith.constant 0 : i32
    %c0_i32_0 = arith.constant 0 : i32
    %c0_i32_1 = arith.constant 0 : i32
    return %c0_i32, %c0_i32_0 : i32, i32
  }
  func.func @transform_2(%arg0: i32) -> (i32, i32, i32) {
    %c0_i32 = arith.constant 0 : i32
    %c0_i32_0 = arith.constant 0 : i32
    %c0_i32_1 = arith.constant 0 : i32
    return %arg0, %c0_i32, %c0_i32_0 : i32, i32, i32
  }
  func.func @transform_3(%arg0: i32) -> (i32, i32) {
    %c0_i32 = arith.constant 0 : i32
    %c0_i32_0 = arith.constant 0 : i32
    %c0_i32_1 = arith.constant 0 : i32
    return %c0_i32, %c0_i32_0 : i32, i32
  }
  func.func @transform_4(%arg0: i32) -> (i32, i32) {
    %c0_i32 = arith.constant 0 : i32
    %c0_i32_0 = arith.constant 0 : i32
    %c0_i32_1 = arith.constant 0 : i32
    return %c0_i32, %c0_i32_0 : i32, i32
  }
}

</mosaic_0001>

<llo_original>
// kernel: tpu_custom_call.1
$region0: #{tpu_custom_call.1}
  #allocation0 [shape = 'u32[]', space=smem, size = 0x4, offset = 0x4, fixed_abs, tag = 'smem constant byte address 0x4 - core index']
  #allocation1 [shape = 'u32[144,128]{1,0:T(1,128)}', space=vmem, size = 0x12000, scoped, tag = 'internal scratch']
  #allocation2 [shape = 'f32[4,18]{1,0:T(4,128)}', space=vmem, size = 0x800, scoped, tag = 'scratch operand']
  %s0 = inlined_call_operand.hbm [shape: f32[2,4,16], index: 0, kind: input, shape index: {}]
  %s1 = inlined_call_operand.hbm [shape: f32[8,12], index: 1, kind: input, shape index: {}]
  %s2 = inlined_call_operand.hbm [shape: f32[2,8,16], index: 2, kind: output, shape index: {0}]
  %s3 = inlined_call_operand.vmem [shape: f32[8,1], index: 3, kind: output, shape index: {1}]
  %s4 = inlined_call_operand.vmem [shape: f32[8,1], index: 4, kind: output, shape index: {2}]
  %5 = xla_tuple %s2, %s3, %s4
  %s6 = sld [smem:[#allocation0]]
  $region69: #{tpu_custom_call.1} parent=0
    _
  %s8 = ssub.s32 1, %s6
  %s9 = scalar_select 0, %s8, %s6
  $region1: #{tpu_custom_call.1} parent=0
    #allocation3 [shape = 'u8[4096]{0}', space=vmem, size = 0x1000, scoped, tag = 'input window, operand 0']
    #allocation4 [shape = 's32[2]{0}', space=sflag, size = 0x8, scoped, tag = 'scoped memory for tpu_custom_call.1']
    #allocation5 [shape = 's32[2]{0}', space=sflag, size = 0x8, scoped, tag = 'scoped memory for tpu_custom_call.1']
    #allocation6 [shape = 'u8[4096]{0}', space=vmem, size = 0x1000, scoped, tag = 'input window, operand 1, single buffered']
    #allocation7 [shape = 's32[1]{0}', space=sflag, size = 0x4, scoped, tag = 'scoped memory for tpu_custom_call.1']
    #allocation8 [shape = 'u8[8192]{0}', space=vmem, size = 0x2000, scoped, tag = 'output window, operand 0']
    %10 = vsyncpa [#allocation4], 0
    %s11 = scalar_lea.sflag [#allocation4], 1
    %12 = vsyncpa %s11, 0
    %13 = vsyncpa [#allocation7], 0
    %14 = vsyncpa [#allocation5], 0
    %s15 = scalar_lea.sflag [#allocation5], 1
    %16 = vsyncpa %s15, 0
    loop: start=0, step=1, limit=4
    $region2: #{tpu_custom_call.1} parent=1 // loop_pre_header
      _
    $region3: #{tpu_custom_call.1} parent=1 // loop_header
      %s18 = sphi 0, %s22
      %p19 = scmp.ge.s32.totalorder %s18, 4
      %s28 = sphi 0, %s30
      %s31 = sphi 0, %s28
      %s32 = sphi 0, %s31
      %s48 = sphi 0, %s32
      %s52 = sphi 0, %s52
      %s54 = sphi 0, %s52
      %s55 = sphi 0, %s54
      %s69 = sphi 0, %s55
      %s75 = sphi 0, %s77
      %s78 = sphi 0, %s75
      %s79 = sphi 0, %s78
      %s95 = sphi 0, %s79
      %s99 = sphi 0, %s99
      %s101 = sphi 0, %s99
      %s102 = sphi 0, %s101
      %s116 = sphi 0, %s102
      %s120 = sphi 0, %s120
      %s122 = sphi 0, %s120
      %s123 = sphi 0, %s122
      %s137 = sphi 0, %s123
    $region4: #{tpu_custom_call.1} parent=1 // loop_header_branch
      %21 = sbr.rel (%p19) target = $region8
    $region5: #{tpu_custom_call.1} parent=1 // loop_body
      %s23 = ssub.s32 %s18, 1
      %s24 = ssub.s32 %s18, 2
      %s25 = sadd.s32 %s18, 1
      %s26 = ssub.s32 %s18, %s25
      %p27 = scmp.eq.s32.totalorder %s26, 0
      %s29 = sadd.s32 %s28, 1
      %s30 = scalar_select %p27, %s28, %s29
      %p33 = pneg %p27
      %p34 = scmp.eq.s32.totalorder %s18, 1
      %p35 = por %p33, %p34
      %p36 = scmp.ne.s32.totalorder %s28, %s31
      %p37 = scmp.eq.s32.totalorder %s18, 0
      %p38 = por %p36, %p37
      %p39 = scmp.ne.s32.totalorder %s28, %s31
      %p40 = scmp.eq.s32.totalorder %s23, 1
      %p41 = por %p39, %p40
      %p42 = scmp.ne.s32.totalorder %s31, %s32
      %p43 = scmp.eq.s32.totalorder %s23, 0
      %p44 = por %p42, %p43
      %p45 = scmp.ne.s32.totalorder %s31, %s32
      %p46 = scmp.eq.s32.totalorder %s24, 1
      %p47 = por %p45, %p46
      %p49 = scmp.ne.s32.totalorder %s32, %s48
      %p50 = scmp.eq.s32.totalorder %s24, 0
      %p51 = por %p49, %p50
      %s53 = sadd.s32 %s52, 1
      %p56 = scmp.eq.s32.totalorder %s18, 1
      %p57 = scmp.ne.s32.totalorder %s52, %s54
      %p58 = scmp.eq.s32.totalorder %s18, 0
      %p59 = por %p57, %p58
      %p60 = scmp.ne.s32.totalorder %s52, %s54
      %p61 = scmp.eq.s32.totalorder %s23, 1
      %p62 = por %p60, %p61
      %p63 = scmp.ne.s32.totalorder %s54, %s55
      %p64 = scmp.eq.s32.totalorder %s23, 0
      %p65 = por %p63, %p64
      %p66 = scmp.ne.s32.totalorder %s54, %s55
      %p67 = scmp.eq.s32.totalorder %s24, 1
      %p68 = por %p66, %p67
      %p70 = scmp.ne.s32.totalorder %s55, %s69
      %p71 = scmp.eq.s32.totalorder %s24, 0
      %p72 = por %p70, %p71
      %s73 = ssub.s32 %s18, %s25
      %p74 = scmp.eq.s32.totalorder %s73, 0
      %s76 = sadd.s32 %s75, 1
      %s77 = scalar_select %p74, %s75, %s76
      %p80 = pneg %p74
      %p81 = scmp.eq.s32.totalorder %s18, 1
      %p82 = por %p80, %p81
      %p83 = scmp.ne.s32.totalorder %s75, %s78
      %p84 = scmp.eq.s32.totalorder %s18, 0
      %p85 = por %p83, %p84
      %p86 = scmp.ne.s32.totalorder %s75, %s78
      %p87 = scmp.eq.s32.totalorder %s23, 1
      %p88 = por %p86, %p87
      %p89 = scmp.ne.s32.totalorder %s78, %s79
      %p90 = scmp.eq.s32.totalorder %s23, 0
      %p91 = por %p89, %p90
      %p92 = scmp.ne.s32.totalorder %s78, %s79
      %p93 = scmp.eq.s32.totalorder %s24, 1
      %p94 = por %p92, %p93
      %p96 = scmp.ne.s32.totalorder %s79, %s95
      %p97 = scmp.eq.s32.totalorder %s24, 0
      %p98 = por %p96, %p97
      %s100 = sadd.s32 %s99, 1
      %p103 = scmp.eq.s32.totalorder %s18, 1
      %p104 = scmp.ne.s32.totalorder %s99, %s101
      %p105 = scmp.eq.s32.totalorder %s18, 0
      %p106 = por %p104, %p105
      %p107 = scmp.ne.s32.totalorder %s99, %s101
      %p108 = scmp.eq.s32.totalorder %s23, 1
      %p109 = por %p107, %p108
      %p110 = scmp.ne.s32.totalorder %s101, %s102
      %p111 = scmp.eq.s32.totalorder %s23, 0
      %p112 = por %p110, %p111
      %p113 = scmp.ne.s32.totalorder %s101, %s102
      %p114 = scmp.eq.s32.totalorder %s24, 1
      %p115 = por %p113, %p114
      %p117 = scmp.ne.s32.totalorder %s102, %s116
      %p118 = scmp.eq.s32.totalorder %s24, 0
      %p119 = por %p117, %p118
      %s121 = sadd.s32 %s120, 1
      %p124 = scmp.eq.s32.totalorder %s18, 1
      %p125 = scmp.ne.s32.totalorder %s120, %s122
      %p126 = scmp.eq.s32.totalorder %s18, 0
      %p127 = por %p125, %p126
      %p128 = scmp.ne.s32.totalorder %s120, %s122
      %p129 = scmp.eq.s32.totalorder %s23, 1
      %p130 = por %p128, %p129
      %p131 = scmp.ne.s32.totalorder %s122, %s123
      %p132 = scmp.eq.s32.totalorder %s23, 0
      %p133 = por %p131, %p132
      %p134 = scmp.ne.s32.totalorder %s122, %s123
      %p135 = scmp.eq.s32.totalorder %s24, 1
      %p136 = por %p134, %p135
      %p138 = scmp.ne.s32.totalorder %s123, %s137
      %p139 = scmp.eq.s32.totalorder %s24, 0
      %p140 = por %p138, %p139
      %p141 = scmp.le.s32.totalorder 1, %s18
      %p142 = scmp.lt.s32.totalorder %s18, 3
      %p143 = pnand %p141, %p142
      %p144 = pneg %p143
      // Predicated region
      $region9: #{tpu_custom_call.1} parent=5 // pred_check
        _
      $region10: #{tpu_custom_call.1} parent=5 // pred_check_branch
        %146 = sbr.rel (%p143) target = $region12
      $region11: #{tpu_custom_call.1} parent=5 // pred_region
        %s147 = ssub.s32 %s18, 1
        // Predicated region
        $region13: #{tpu_custom_call.1} parent=11 // pred_check
          %p148 = pneg %p65
        $region14: #{tpu_custom_call.1} parent=11 // pred_check_branch
          %150 = sbr.rel (%p148) target = $region16
        $region15: #{tpu_custom_call.1} parent=11 // pred_region
          %s152 = ssub.s32 128, 128
          %153 = vsyncadd [#allocation7], %s152
          %s155 = sshll.u32 [#allocation6], 4
          %s156 = int_to_ptr.vmem [resolvable:$true] %s155
          %158 = dma.hbm_to_vmem [thread:$0]  %s1, 128, %s156, [#allocation7]
        $region16: #{tpu_custom_call.1} parent=11 // pred_fallthru
          _
      $region12: #{tpu_custom_call.1} parent=5 // pred_fallthru
        _
      %p159 = scmp.lt.s32.totalorder %s18, 2
      // Predicated region
      $region17: #{tpu_custom_call.1} parent=5 // pred_check
        %p160 = pneg %p159
      $region18: #{tpu_custom_call.1} parent=5 // pred_check_branch
        %162 = sbr.rel (%p160) target = $region20
      $region19: #{tpu_custom_call.1} parent=5 // pred_region
        // Predicated region
        $region21: #{tpu_custom_call.1} parent=19 // pred_check
          %p163 = pneg %p38
        $region22: #{tpu_custom_call.1} parent=19 // pred_check_branch
          %165 = sbr.rel (%p163) target = $region24
        $region23: #{tpu_custom_call.1} parent=19 // pred_region
          %s166 = sand.u32 %s28, 1
          %s167 = scalar_lea.sflag [#allocation4], %s166
          %s168 = sand.u32 %s28, 1
          %s169 = smul.addr %s168, 4
          %s170 = scalar_lea.vmem [#allocation3], %s169
          %s172 = ssub.s32 64, 64
          %173 = vsyncadd %s167, %s172
          %s174 = smul.addr %s18, 64
          %s175 = scalar_lea.hbm %s0, %s174
          %s177 = sshll.u32 %s170, 4
          %s178 = int_to_ptr.vmem [resolvable:$true] %s177
          %180 = dma.hbm_to_vmem [thread:$0]  %s175, 64, %s178, %s167
        $region24: #{tpu_custom_call.1} parent=19 // pred_fallthru
          _
      $region20: #{tpu_custom_call.1} parent=5 // pred_fallthru
        _
      %p181 = scmp.le.s32.totalorder 1, %s18
      %p182 = scmp.lt.s32.totalorder %s18, 3
      %p183 = pnand %p181, %p182
      %p184 = pneg %p183
      // Predicated region
      $region25: #{tpu_custom_call.1} parent=5 // pred_check
        _
      $region26: #{tpu_custom_call.1} parent=5 // pred_check_branch
        %186 = sbr.rel (%p183) target = $region28
      $region27: #{tpu_custom_call.1} parent=5 // pred_region
        %s187 = ssub.s32 %s18, 1
        %s188 = sand.u32 %s31, 1
        %s189 = scalar_lea.sflag [#allocation4], %s188
        %s190 = sand.u32 %s31, 1
        %s191 = smul.addr %s190, 4
        %s192 = scalar_lea.vmem [#allocation3], %s191
        // Predicated region
        $region29: #{tpu_custom_call.1} parent=27 // pred_check
          %p193 = pneg %p44
        $region30: #{tpu_custom_call.1} parent=27 // pred_check_branch
          %195 = sbr.rel (%p193) target = $region32
        $region31: #{tpu_custom_call.1} parent=27 // pred_region
          %196 = dma.done %s189, 64
        $region32: #{tpu_custom_call.1} parent=27 // pred_fallthru
          _
        // Predicated region
        $region33: #{tpu_custom_call.1} parent=27 // pred_check
          %p197 = pneg %p65
        $region34: #{tpu_custom_call.1} parent=27 // pred_check_branch
          %199 = sbr.rel (%p197) target = $region36
        $region35: #{tpu_custom_call.1} parent=27 // pred_region
          %200 = dma.done [#allocation7], 128
        $region36: #{tpu_custom_call.1} parent=27 // pred_fallthru
          _
        %s201 = sand.u32 %s31, 1
        %s202 = scalar_lea.sflag [#allocation4], %s201
        %s203 = sand.u32 %s31, 1
        %s204 = smul.addr %s203, 4
        %s205 = scalar_lea.vmem [#allocation3], %s204
        %p206 = pneg %p44
        %p207 = pneg %p41
        %p208 = pneg %p65
        %p209 = pneg %p62
        %p210 = pneg %p91
        %p211 = pneg %p88
        %s212 = sand.u32 %s78, 1
        %s213 = scalar_lea.sflag [#allocation5], %s212
        %s214 = sand.u32 %s78, 1
        %s215 = smul.addr %s214, 8
        %s216 = scalar_lea.vmem [#allocation8], %s215
        %p217 = pneg %p112
        %p218 = pneg %p109
        %p219 = pneg %p133
        %p220 = pneg %p130
        %v221 = vld [vmem:[%s192] sm:$0xf]
        %v222 = vld [vmem:[#allocation6] sm:$0xff]
        %vm223 = vcmask 3072
        %224 = vst.msk [vmem:[#allocation2] sm:$0xf] %vm223, 0.0
        %vm225 = vcmask 142472
        %226 = vst.msk [vmem:[#allocation2] sm:$0xf] %vm225, 0.0
        %228 = vrot.lane.b32.xlu0 %v221, 1
        %v229 = vpop.permute.xlu0 %228
        %vm231 = vcmask 134152
        %232 = vst.msk [vmem:[#allocation2] sm:$0xf] %vm231, %v229
        %v233 = vld [vmem:[#allocation2] sm:$0xf]
        %v235 = vrot.slane %v233, 4
        %236 = vrot.lane.b32.xlu0 %v235, 127
        %v237 = vpop.permute.xlu0 %236
        %239 = vrot.lane.b32.xlu0 %v233, 126
        %v240 = vpop.permute.xlu0 %239
        %vm241 = vcmask 1043456
        %v242 = vsel %vm241, %v233, %v237
        %vm243 = vcmask 97280
        %v245 = vsel %vm243, %v222, 0
        %v247 = vsel %vm241, %v240, 0
        %249 = vmatprep.subr.mxu0 0.0
        %250 = vmatpush1.msra.mxu0 %v242
        %251 = vmatprep.subr.mxu0 0.0
        %252 = vmatpush1.msra.mxu0 %v247
        %253 = vmatprep.subr.mxu0 0.0
        %254 = vmatpush1.msra.mxu0 0.0
        %255 = vmatprep.subr.mxu0 0.0
        %256 = vmatpush1.msra.mxu0 0.0
        %257 = vmatprep.subr.mxu0 0.0
        %258 = vmatpush1.msra.mxu0 0.0
        %259 = vmatprep.subr.mxu0 0.0
        %260 = vmatpush1.msra.mxu0 0.0
        %261 = vmatprep.subr.mxu0 0.0
        %262 = vmatpush1.msra.mxu0 0.0
        %263 = vmatprep.subr.mxu0 0.0
        %264 = vmatpush1.msra.mxu0 0.0
        %265 = vmatprep.subr.mxu0 0.0
        %266 = vmatpush1.msra.mxu0 0.0
        %267 = vmatprep.subr.mxu0 0.0
        %268 = vmatpush1.msra.mxu0 0.0
        %269 = vmatprep.subr.mxu0 0.0
        %270 = vmatpush1.msra.mxu0 0.0
        %271 = vmatprep.subr.mxu0 0.0
        %272 = vmatpush1.msra.mxu0 0.0
        %273 = vmatprep.subr.mxu0 0.0
        %274 = vmatpush1.msra.mxu0 0.0
        %275 = vmatprep.subr.mxu0 0.0
        %276 = vmatpush1.msra.mxu0 0.0
        %277 = vmatprep.subr.mxu0 0.0
        %278 = vmatpush1.msra.mxu0 0.0
        %279 = vmatprep.subr.mxu0 0.0
        %280 = vmatpush1.msra.mxu0 0.0
        %281 = vmatprep.subr.mxu0 0.0
        %282 = vmatpush1.msra.mxu0 0.0
        %283 = vmatprep.subr.mxu0 0.0
        %284 = vmatpush1.msra.mxu0 0.0
        %285 = vmatprep.subr.mxu0 0.0
        %286 = vmatpush1.msra.mxu0 0.0
        %287 = vmatprep.subr.mxu0 0.0
        %288 = vmatpush1.msra.mxu0 0.0
        %289 = vmatprep.subr.mxu0 0.0
        %290 = vmatpush1.msra.mxu0 0.0
        %291 = vmatprep.subr.mxu0 0.0
        %292 = vmatpush1.msra.mxu0 0.0
        %293 = vmatprep.subr.mxu0 0.0
        %294 = vmatpush1.msra.mxu0 0.0
        %295 = vmatprep.subr.mxu0 0.0
        %296 = vmatpush1.msra.mxu0 0.0
        %297 = vmatprep.subr.mxu0 0.0
        %298 = vmatpush1.msra.mxu0 0.0
        %299 = vmatprep.subr.mxu0 0.0
        %300 = vmatpush1.msra.mxu0 0.0
        %301 = vmatprep.subr.mxu0 0.0
        %302 = vmatpush1.msra.mxu0 0.0
        %303 = vmatprep.subr.mxu0 0.0
        %304 = vmatpush1.msra.mxu0 0.0
        %305 = vmatprep.subr.mxu0 0.0
        %306 = vmatpush1.msra.mxu0 0.0
        %307 = vmatprep.subr.mxu0 0.0
        %308 = vmatpush1.msra.mxu0 0.0
        %309 = vmatprep.subr.mxu0 0.0
        %310 = vmatpush1.msra.mxu0 0.0
        %311 = vmatprep.subr.mxu0 0.0
        %312 = vmatpush1.msra.mxu0 0.0
        %313 = vmatprep.mubr.f32.mxu0 0.0
        %314 = vmatmul.mubr.f32.gmra.mrb[0].mxu0 %v245
        %v315 = vpop.f32.mrb[0].mxu0
        %v316 = vadd.f32 0.0, %v315
        %v317 = vpop.f32.mrb[0].mxu0
        %318 = vdwg.mxu0
        %vm319 = vcmask 130048
        %320 = vst.msk [vmem:[%s216] sm:$0xff] %vm319, %v316
        %p321 = scmp.eq.s32.totalorder %s23, 0
        // Predicated region
        $region37: #{tpu_custom_call.1} parent=27 // pred_check
          %p322 = pneg %p321
        $region38: #{tpu_custom_call.1} parent=27 // pred_check_branch
          %324 = sbr.rel (%p322) target = $region40
        $region39: #{tpu_custom_call.1} parent=27 // pred_region
          %vm325 = vcmask 7168
          %326 = vst.msk [vmem:[%s3] sm:$0xff] %vm325, 0.0
          %327 = vst.msk [vmem:[%s4] sm:$0xff] %vm325, 0.0
        $region40: #{tpu_custom_call.1} parent=27 // pred_fallthru
          _
        %v328 = vld [vmem:[%s3] sm:$0xff]
        %v329 = vsel %vm319, %v316, 0.0
        %330 = vadd.xlane.f32.xlu0 %v329
        %v331 = vpop.xlane.xlu0 %330
        %v332 = vadd.f32 %v328, %v331
        %vm333 = vcmask 7168
        %334 = vst.msk [vmem:[%s3] sm:$0xff] %vm333, %v332
        %v335 = vld [vmem:[%s4] sm:$0xff]
        %v336 = vmul.f32 %v316, %v316
        %v337 = vsel %vm319, %v336, 0.0
        %338 = vadd.xlane.f32.xlu0 %v337
        %v339 = vpop.xlane.xlu0 %338
        %v340 = vadd.f32 %v335, %v339
        %341 = vst.msk [vmem:[%s4] sm:$0xff] %vm333, %v340
        %s342 = sand.u32 %s78, 1
        %s343 = scalar_lea.sflag [#allocation5], %s342
        %s344 = sand.u32 %s78, 1
        %s345 = smul.addr %s344, 8
        %s346 = scalar_lea.vmem [#allocation8], %s345
        // Predicated region
        $region41: #{tpu_custom_call.1} parent=27 // pred_check
          %p347 = pneg %p88
        $region42: #{tpu_custom_call.1} parent=27 // pred_check_branch
          %349 = sbr.rel (%p347) target = $region44
        $region43: #{tpu_custom_call.1} parent=27 // pred_region
          %s351 = ssub.s32 128, 128
          %352 = vsyncadd %s343, %s351
          %s353 = smul.addr %s23, 128
          %s354 = scalar_lea.hbm %s2, %s353
          %s356 = sshll.u32 %s346, 4
          %s357 = int_to_ptr.vmem [resolvable:$true] %s356
          %359 = dma.vmem_to_hbm [thread:$0]  %s357, 128, %s354, %s343
        $region44: #{tpu_custom_call.1} parent=27 // pred_fallthru
          _
        // Predicated region
        $region45: #{tpu_custom_call.1} parent=27 // pred_check
          %p360 = pneg %p109
        $region46: #{tpu_custom_call.1} parent=27 // pred_check_branch
          %362 = sbr.rel (%p360) target = $region48
        $region47: #{tpu_custom_call.1} parent=27 // pred_region
          _
        $region48: #{tpu_custom_call.1} parent=27 // pred_fallthru
          _
        // Predicated region
        $region49: #{tpu_custom_call.1} parent=27 // pred_check
          %p363 = pneg %p130
        $region50: #{tpu_custom_call.1} parent=27 // pred_check_branch
          %365 = sbr.rel (%p363) target = $region52
        $region51: #{tpu_custom_call.1} parent=27 // pred_region
          _
        $region52: #{tpu_custom_call.1} parent=27 // pred_fallthru
          _
        // Predicated region
        $region53: #{tpu_custom_call.1} parent=27 // pred_check
          %p366 = pneg %p109
        $region54: #{tpu_custom_call.1} parent=27 // pred_check_branch
          %368 = sbr.rel (%p366) target = $region56
        $region55: #{tpu_custom_call.1} parent=27 // pred_region
          _
        $region56: #{tpu_custom_call.1} parent=27 // pred_fallthru
          _
        // Predicated region
        $region57: #{tpu_custom_call.1} parent=27 // pred_check
          %p369 = pneg %p130
        $region58: #{tpu_custom_call.1} parent=27 // pred_check_branch
          %371 = sbr.rel (%p369) target = $region60
        $region59: #{tpu_custom_call.1} parent=27 // pred_region
          _
        $region60: #{tpu_custom_call.1} parent=27 // pred_fallthru
          _
      $region28: #{tpu_custom_call.1} parent=5 // pred_fallthru
        _
      %p372 = scmp.le.s32.totalorder 2, %s18
      // Predicated region
      $region61: #{tpu_custom_call.1} parent=5 // pred_check
        %p373 = pneg %p372
      $region62: #{tpu_custom_call.1} parent=5 // pred_check_branch
        %375 = sbr.rel (%p373) target = $region64
      $region63: #{tpu_custom_call.1} parent=5 // pred_region
        %s376 = ssub.s32 %s18, 2
        // Predicated region
        $region65: #{tpu_custom_call.1} parent=63 // pred_check
          %p377 = pneg %p94
        $region66: #{tpu_custom_call.1} parent=63 // pred_check_branch
          %379 = sbr.rel (%p377) target = $region68
        $region67: #{tpu_custom_call.1} parent=63 // pred_region
          %s380 = sand.u32 %s79, 1
          %s381 = scalar_lea.sflag [#allocation5], %s380
          %s382 = sand.u32 %s79, 1
          %s383 = smul.addr %s382, 8
          %s384 = scalar_lea.vmem [#allocation8], %s383
          %385 = dma.done %s381, 128
        $region68: #{tpu_custom_call.1} parent=63 // pred_fallthru
          _
      $region64: #{tpu_custom_call.1} parent=5 // pred_fallthru
        _
    $region6: #{tpu_custom_call.1} parent=1 // loop_footer
      %s22 = sadd.s32 1, %s18
    $region7: #{tpu_custom_call.1} parent=1 // loop_footer_branch
      %17 = sbr.rel target = $region3
    $region8: #{tpu_custom_call.1} parent=1 // loop_exit
      _
    %386 = vsyncpa [#allocation4], 1
    %s387 = scalar_lea.sflag [#allocation4], 1
    %388 = vsyncpa %s387, 1
    %389 = vsyncpa [#allocation7], 1
    %390 = vsyncpa [#allocation5], 1
    %s391 = scalar_lea.sflag [#allocation5], 1
    %392 = vsyncpa %s391, 1

</llo_original>
